<compile_context>
chip_gen: v6e
topology: v6e:2x2x1
jax: 0.10.0
libtpu: 0.0.40
codegen_flags: <defaults>
</compile_context>

<pallas_src>
import jax
import jax.numpy as jnp
from jax.experimental import pallas as pl
from jax.experimental.pallas import tpu as pltpu


HIDDEN = 256          # TD3+BC default hidden size (fills the 256-wide MXU)
MAX_BATCH_TILE = 2048


def _double_q_kernel(x_ref, w1_ref, b1_ref, w2_ref, b2_ref, w3_ref, b3_ref,
                     out_ref):
    """Both Q heads on one batch tile.  x_ref: (tb, in_dim) f32."""
    x = x_ref[...].astype(jnp.bfloat16)
    for h in range(2):  # static unroll: two heads back-to-back
        h1 = jnp.dot(x, w1_ref[h], preferred_element_type=jnp.float32)
        h1 = jnp.maximum(h1 + b1_ref[h], 0.0).astype(jnp.bfloat16)
        h2 = jnp.dot(h1, w2_ref[h], preferred_element_type=jnp.float32)
        h2 = jnp.maximum(h2 + b2_ref[h], 0.0)
        # Final (hidden -> 1) layer off the MXU: VPU mul + XLU lane reduce.
        y = jnp.sum(h2 * w3_ref[h].astype(jnp.float32), axis=-1, keepdims=True)
        out_ref[h, :, :] = (y + b3_ref[h]).astype(out_ref.dtype)


def _batch_tiling(batch):
    """Return (tile, padded_batch): tile is a multiple of 8, <= MAX_BATCH_TILE."""
    padded = -(-batch // 8) * 8
    if padded <= MAX_BATCH_TILE:
        return padded, padded
    tb = MAX_BATCH_TILE
    padded = -(-batch // tb) * tb
    return tb, padded


@jax.jit
def double_q_forward(state, action, params):
    """DoubleQFunc.forward: (state, action) -> (Q1, Q2), each [B, 1]."""
    w1, b1, w2, b2, w3, b3 = params
    batch = state.shape[0]
    in_dim = state.shape[1] + action.shape[1]
    hidden = w2.shape[-1]

    # Merge layer-1 inputs once in the wrapper (trivial mem-op, review item 3).
    x = jnp.concatenate([state, action], axis=1).astype(jnp.float32)

    tb, padded = _batch_tiling(batch)
    if padded != batch:
        x = jnp.pad(x, ((0, padded - batch), (0, 0)))
    nb = padded // tb

    flops = 2 * 2 * padded * (in_dim * hidden + hidden * hidden + hidden)
    bytes_accessed = (x.size * 4
                      + sum(int(p.size) * p.dtype.itemsize for p in params)
                      + 2 * padded * 4)

    out = pl.pallas_call(
        _double_q_kernel,
        out_shape=jax.ShapeDtypeStruct((2, padded, 1), jnp.float32),
        grid_spec=pltpu.PrefetchScalarGridSpec(
            num_scalar_prefetch=0,
            grid=(nb,),
            in_specs=[
                # activations: tiled over batch
                pl.BlockSpec((tb, in_dim), lambda b: (b, 0)),
                # both heads' params: constant index_map -> stay VMEM-resident
                pl.BlockSpec((2, in_dim, hidden), lambda b: (0, 0, 0)),
                pl.BlockSpec((2, 1, hidden), lambda b: (0, 0, 0)),
                pl.BlockSpec((2, hidden, hidden), lambda b: (0, 0, 0)),
                pl.BlockSpec((2, 1, hidden), lambda b: (0, 0, 0)),
                pl.BlockSpec((2, 1, hidden), lambda b: (0, 0, 0)),
                pl.BlockSpec((2, 1, 1), lambda b: (0, 0, 0)),
            ],
            out_specs=pl.BlockSpec((2, tb, 1), lambda b: (0, b, 0)),
        ),
        compiler_params=pltpu.CompilerParams(
            dimension_semantics=("parallel",)),
        cost_estimate=pl.CostEstimate(
            flops=flops, transcendentals=0, bytes_accessed=bytes_accessed),
    )(x, w1, b1, w2, b2, w3, b3)

    q1 = out[0, :batch, :]
    q2 = out[1, :batch, :]
    return q1, q2


def init_double_q_params(key, state_dim, action_dim, hidden_size=HIDDEN):
    """torch.nn.Linear-style init (U[-1/sqrt(fan_in), +1/sqrt(fan_in)]).

    Weights stored transposed ([in, out]) in bfloat16; biases in float32;
    both heads stacked on a leading axis of size 2; the final layer is kept
    as a row vector (1, hidden) since it is computed off the MXU."""
    in_dim = state_dim + action_dim
    keys = jax.random.split(key, 12)

    def lin(kw, kb, fan_in, fan_out):
        bound = float(fan_in) ** -0.5
        w = jax.random.uniform(kw, (fan_in, fan_out), jnp.float32, -bound, bound)
        b = jax.random.uniform(kb, (1, fan_out), jnp.float32, -bound, bound)
        return w, b

    def one_head(ks):
        w1, b1 = lin(ks[0], ks[1], in_dim, hidden_size)
        w2, b2 = lin(ks[2], ks[3], hidden_size, hidden_size)
        w3, b3 = lin(ks[4], ks[5], hidden_size, 1)
        return (w1.astype(jnp.bfloat16), b1,
                w2.astype(jnp.bfloat16), b2,
                w3.T.astype(jnp.bfloat16),        # (1, hidden) row vector
                b3.reshape(1, 1))

    head1 = one_head(keys[:6])
    head2 = one_head(keys[6:])
    return tuple(jnp.stack([a, b]) for a, b in zip(head1, head2))


def _reference(state, action, params):
    """Pure-JAX reference with the same precision policy (concat + twin MLP)."""
    w1, b1, w2, b2, w3, b3 = params
    x = jnp.concatenate([state, action], axis=1).astype(jnp.float32)
    xb = x.astype(jnp.bfloat16)
    outs = []
    for h in range(2):
        h1 = jnp.dot(xb, w1[h], preferred_element_type=jnp.float32) + b1[h]
        h1 = jnp.maximum(h1, 0.0).astype(jnp.bfloat16)
        h2 = jnp.dot(h1, w2[h], preferred_element_type=jnp.float32) + b2[h]
        h2 = jnp.maximum(h2, 0.0)
        y = jnp.sum(h2 * w3[h].astype(jnp.float32), axis=-1, keepdims=True) + b3[h]
        outs.append(y)
    return outs[0], outs[1]


if __name__ == "__main__":
    key = jax.random.PRNGKey(0)
    k_state, k_action, k_params = jax.random.split(key, 3)

    batch = 8
    state_dim = 12
    action_dim = 4

    state = jax.random.normal(k_state, (batch, state_dim), jnp.float32)
    action = jax.random.normal(k_action, (batch, action_dim), jnp.float32)
    params = init_double_q_params(k_params, state_dim, action_dim, HIDDEN)

    q1, q2 = double_q_forward(state, action, params)
    jax.block_until_ready((q1, q2))

    r1, r2 = _reference(state, action, params)
    assert q1.shape == (batch, 1) and q2.shape == (batch, 1)
    assert jnp.allclose(q1, r1, atol=1e-2, rtol=1e-2), "Q1 mismatch vs reference"
    assert jnp.allclose(q2, r2, atol=1e-2, rtol=1e-2), "Q2 mismatch vs reference"

    print("KERNEL_OK")
</pallas_src>

<mosaic_0001>
module attributes {stable_mosaic.version = 11 : i64} {
  func.func @_double_q_kernel(%arg0: i32, %arg1: memref<8x16xf32, #tpu.memory_space<vmem>>, %arg2: memref<2x16x256xbf16, #tpu.memory_space<vmem>>, %arg3: memref<2x1x256xf32, #tpu.memory_space<vmem>>, %arg4: memref<2x256x256xbf16, #tpu.memory_space<vmem>>, %arg5: memref<2x1x256xf32, #tpu.memory_space<vmem>>, %arg6: memref<2x1x256xbf16, #tpu.memory_space<vmem>>, %arg7: memref<2x1x1xf32, #tpu.memory_space<vmem>>, %arg8: memref<2x8x1xf32, #tpu.memory_space<vmem>>) attributes {dimension_semantics = [#tpu.dimension_semantics<parallel>], iteration_bounds = array<i64: 1>, scalar_prefetch = 0 : i64, scratch_operands = 0 : i64, tpu.core_type = #tpu.core_type<tc>, window_params = [{transform_indices = @transform_0, window_bounds = array<i64: 8, 16>}, {pipeline_mode = #tpu.pipeline_mode<synchronous>, transform_indices = @transform_1, window_bounds = array<i64: 2, 16, 256>}, {pipeline_mode = #tpu.pipeline_mode<synchronous>, transform_indices = @transform_2, window_bounds = array<i64: 2, 1, 256>}, {pipeline_mode = #tpu.pipeline_mode<synchronous>, transform_indices = @transform_3, window_bounds = array<i64: 2, 256, 256>}, {pipeline_mode = #tpu.pipeline_mode<synchronous>, transform_indices = @transform_4, window_bounds = array<i64: 2, 1, 256>}, {pipeline_mode = #tpu.pipeline_mode<synchronous>, transform_indices = @transform_5, window_bounds = array<i64: 2, 1, 256>}, {pipeline_mode = #tpu.pipeline_mode<synchronous>, transform_indices = @transform_6, window_bounds = array<i64: 2, 1, 1>}, {transform_indices = @transform_7, window_bounds = array<i64: 2, 8, 1>}]} {
    %c0 = arith.constant 0 : index
    %c0_0 = arith.constant 0 : index
    %0 = vector.load %arg1[%c0, %c0_0] : memref<8x16xf32, #tpu.memory_space<vmem>>, vector<8x16xf32>
    %1 = arith.truncf %0 : vector<8x16xf32> to vector<8x16xbf16>
    %c0_1 = arith.constant 0 : index
    %c0_2 = arith.constant 0 : index
    %c0_3 = arith.constant 0 : index
    %2 = vector.load %arg2[%c0_1, %c0_2, %c0_3] : memref<2x16x256xbf16, #tpu.memory_space<vmem>>, vector<1x16x256xbf16>
    %3 = vector.shape_cast %2 : vector<1x16x256xbf16> to vector<16x256xbf16>
    %cst = arith.constant dense<0.000000e+00> : vector<8x256xf32>
    %4 = tpu.matmul %1, %3, %cst {dimension_numbers = #tpu.dot_dimension_numbers<[1], [0], [0], [1], [0, 0, 1, 1], [], []>} : vector<8x16xbf16>, vector<16x256xbf16>, vector<8x256xf32> -> vector<8x256xf32>
    %c0_4 = arith.constant 0 : index
    %c0_5 = arith.constant 0 : index
    %c0_6 = arith.constant 0 : index
    %5 = vector.load %arg3[%c0_4, %c0_5, %c0_6] : memref<2x1x256xf32, #tpu.memory_space<vmem>>, vector<1x1x256xf32>
    %6 = vector.shape_cast %5 : vector<1x1x256xf32> to vector<1x256xf32>
    %7 = vector.broadcast %6 : vector<1x256xf32> to vector<8x256xf32>
    %8 = arith.addf %4, %7 : vector<8x256xf32>
    %cst_7 = arith.constant 0.000000e+00 : f32
    %9 = vector.broadcast %cst_7 : f32 to vector<8x256xf32>
    %10 = arith.maximumf %8, %9 : vector<8x256xf32>
    %11 = arith.truncf %10 : vector<8x256xf32> to vector<8x256xbf16>
    %c0_8 = arith.constant 0 : index
    %c0_9 = arith.constant 0 : index
    %c0_10 = arith.constant 0 : index
    %12 = vector.load %arg4[%c0_8, %c0_9, %c0_10] : memref<2x256x256xbf16, #tpu.memory_space<vmem>>, vector<1x256x256xbf16>
    %13 = vector.shape_cast %12 : vector<1x256x256xbf16> to vector<256x256xbf16>
    %cst_11 = arith.constant dense<0.000000e+00> : vector<8x256xf32>
    %14 = tpu.matmul %11, %13, %cst_11 {dimension_numbers = #tpu.dot_dimension_numbers<[1], [0], [0], [1], [0, 0, 1, 1], [], []>} : vector<8x256xbf16>, vector<256x256xbf16>, vector<8x256xf32> -> vector<8x256xf32>
    %c0_12 = arith.constant 0 : index
    %c0_13 = arith.constant 0 : index
    %c0_14 = arith.constant 0 : index
    %15 = vector.load %arg5[%c0_12, %c0_13, %c0_14] : memref<2x1x256xf32, #tpu.memory_space<vmem>>, vector<1x1x256xf32>
    %16 = vector.shape_cast %15 : vector<1x1x256xf32> to vector<1x256xf32>
    %17 = vector.broadcast %16 : vector<1x256xf32> to vector<8x256xf32>
    %18 = arith.addf %14, %17 : vector<8x256xf32>
    %cst_15 = arith.constant 0.000000e+00 : f32
    %19 = vector.broadcast %cst_15 : f32 to vector<8x256xf32>
    %20 = arith.maximumf %18, %19 : vector<8x256xf32>
    %c0_16 = arith.constant 0 : index
    %c0_17 = arith.constant 0 : index
    %c0_18 = arith.constant 0 : index
    %21 = vector.load %arg6[%c0_16, %c0_17, %c0_18] : memref<2x1x256xbf16, #tpu.memory_space<vmem>>, vector<1x1x256xbf16>
    %22 = vector.shape_cast %21 : vector<1x1x256xbf16> to vector<1x256xbf16>
    %23 = arith.extf %22 : vector<1x256xbf16> to vector<1x256xf32>
    %24 = vector.broadcast %23 : vector<1x256xf32> to vector<8x256xf32>
    %25 = arith.mulf %20, %24 : vector<8x256xf32>
    %cst_19 = arith.constant dense<0.000000e+00> : vector<8xf32>
    %26 = vector.multi_reduction <add>, %25, %cst_19 [1] : vector<8x256xf32> to vector<8xf32>
    %27 = vector.shape_cast %26 : vector<8xf32> to vector<8x1xf32>
    %c0_20 = arith.constant 0 : index
    %c0_21 = arith.constant 0 : index
    %c0_22 = arith.constant 0 : index
    %28 = vector.load %arg7[%c0_20, %c0_21, %c0_22] : memref<2x1x1xf32, #tpu.memory_space<vmem>>, vector<1x1x1xf32>
    %29 = vector.shape_cast %28 : vector<1x1x1xf32> to vector<1x1xf32>
    %30 = vector.broadcast %29 : vector<1x1xf32> to vector<8x1xf32>
    %31 = arith.addf %27, %30 : vector<8x1xf32>
    %c0_23 = arith.constant 0 : index
    %c0_24 = arith.constant 0 : index
    %c0_25 = arith.constant 0 : index
    %32 = vector.load %arg8[%c0_23, %c0_24, %c0_25] : memref<2x8x1xf32, #tpu.memory_space<vmem>>, vector<1x8x1xf32>
    %33 = vector.shape_cast %32 : vector<1x8x1xf32> to vector<8x1xf32>
    %34 = vector.shape_cast %31 : vector<8x1xf32> to vector<1x8x1xf32>
    tpu.vector_store %arg8[%c0_23, %c0_24, %c0_25], %34 {strides = array<i32>} : memref<2x8x1xf32, #tpu.memory_space<vmem>>, vector<1x8x1xf32>,
    %c1 = arith.constant 1 : index
    %c0_26 = arith.constant 0 : index
    %c0_27 = arith.constant 0 : index
    %35 = vector.load %arg2[%c1, %c0_26, %c0_27] : memref<2x16x256xbf16, #tpu.memory_space<vmem>>, vector<1x16x256xbf16>
    %36 = vector.shape_cast %35 : vector<1x16x256xbf16> to vector<16x256xbf16>
    %cst_28 = arith.constant dense<0.000000e+00> : vector<8x256xf32>
    %37 = tpu.matmul %1, %36, %cst_28 {dimension_numbers = #tpu.dot_dimension_numbers<[1], [0], [0], [1], [0, 0, 1, 1], [], []>} : vector<8x16xbf16>, vector<16x256xbf16>, vector<8x256xf32> -> vector<8x256xf32>
    %c1_29 = arith.constant 1 : index
    %c0_30 = arith.constant 0 : index
    %c0_31 = arith.constant 0 : index
    %38 = vector.load %arg3[%c1_29, %c0_30, %c0_31] : memref<2x1x256xf32, #tpu.memory_space<vmem>>, vector<1x1x256xf32>
    %39 = vector.shape_cast %38 : vector<1x1x256xf32> to vector<1x256xf32>
    %40 = vector.broadcast %39 : vector<1x256xf32> to vector<8x256xf32>
    %41 = arith.addf %37, %40 : vector<8x256xf32>
    %cst_32 = arith.constant 0.000000e+00 : f32
    %42 = vector.broadcast %cst_32 : f32 to vector<8x256xf32>
    %43 = arith.maximumf %41, %42 : vector<8x256xf32>
    %44 = arith.truncf %43 : vector<8x256xf32> to vector<8x256xbf16>
    %c1_33 = arith.constant 1 : index
    %c0_34 = arith.constant 0 : index
    %c0_35 = arith.constant 0 : index
    %45 = vector.load %arg4[%c1_33, %c0_34, %c0_35] : memref<2x256x256xbf16, #tpu.memory_space<vmem>>, vector<1x256x256xbf16>
    %46 = vector.shape_cast %45 : vector<1x256x256xbf16> to vector<256x256xbf16>
    %cst_36 = arith.constant dense<0.000000e+00> : vector<8x256xf32>
    %47 = tpu.matmul %44, %46, %cst_36 {dimension_numbers = #tpu.dot_dimension_numbers<[1], [0], [0], [1], [0, 0, 1, 1], [], []>} : vector<8x256xbf16>, vector<256x256xbf16>, vector<8x256xf32> -> vector<8x256xf32>
    %c1_37 = arith.constant 1 : index
    %c0_38 = arith.constant 0 : index
    %c0_39 = arith.constant 0 : index
    %48 = vector.load %arg5[%c1_37, %c0_38, %c0_39] : memref<2x1x256xf32, #tpu.memory_space<vmem>>, vector<1x1x256xf32>
    %49 = vector.shape_cast %48 : vector<1x1x256xf32> to vector<1x256xf32>
    %50 = vector.broadcast %49 : vector<1x256xf32> to vector<8x256xf32>
    %51 = arith.addf %47, %50 : vector<8x256xf32>
    %cst_40 = arith.constant 0.000000e+00 : f32
    %52 = vector.broadcast %cst_40 : f32 to vector<8x256xf32>
    %53 = arith.maximumf %51, %52 : vector<8x256xf32>
    %c1_41 = arith.constant 1 : index
    %c0_42 = arith.constant 0 : index
    %c0_43 = arith.constant 0 : index
    %54 = vector.load %arg6[%c1_41, %c0_42, %c0_43] : memref<2x1x256xbf16, #tpu.memory_space<vmem>>, vector<1x1x256xbf16>
    %55 = vector.shape_cast %54 : vector<1x1x256xbf16> to vector<1x256xbf16>
    %56 = arith.extf %55 : vector<1x256xbf16> to vector<1x256xf32>
    %57 = vector.broadcast %56 : vector<1x256xf32> to vector<8x256xf32>
    %58 = arith.mulf %53, %57 : vector<8x256xf32>
    %cst_44 = arith.constant dense<0.000000e+00> : vector<8xf32>
    %59 = vector.multi_reduction <add>, %58, %cst_44 [1] : vector<8x256xf32> to vector<8xf32>
    %60 = vector.shape_cast %59 : vector<8xf32> to vector<8x1xf32>
    %c1_45 = arith.constant 1 : index
    %c0_46 = arith.constant 0 : index
    %c0_47 = arith.constant 0 : index
    %61 = vector.load %arg7[%c1_45, %c0_46, %c0_47] : memref<2x1x1xf32, #tpu.memory_space<vmem>>, vector<1x1x1xf32>
    %62 = vector.shape_cast %61 : vector<1x1x1xf32> to vector<1x1xf32>
    %63 = vector.broadcast %62 : vector<1x1xf32> to vector<8x1xf32>
    %64 = arith.addf %60, %63 : vector<8x1xf32>
    %c1_48 = arith.constant 1 : index
    %c0_49 = arith.constant 0 : index
    %c0_50 = arith.constant 0 : index
    %65 = vector.load %arg8[%c1_48, %c0_49, %c0_50] : memref<2x8x1xf32, #tpu.memory_space<vmem>>, vector<1x8x1xf32>
    %66 = vector.shape_cast %65 : vector<1x8x1xf32> to vector<8x1xf32>
    %67 = vector.shape_cast %64 : vector<8x1xf32> to vector<1x8x1xf32>
    tpu.vector_store %arg8[%c1_48, %c0_49, %c0_50], %67 {strides = array<i32>} : memref<2x8x1xf32, #tpu.memory_space<vmem>>, vector<1x8x1xf32>,
    return
  }
  func.func @transform_0(%arg0: i32) -> (i32, i32) {
    %c0_i32 = arith.constant 0 : i32
    %c0_i32_0 = arith.constant 0 : i32
    return %arg0, %c0_i32 : i32, i32
  }
  func.func @transform_1(%arg0: i32) -> (i32, i32, i32) {
    %c0_i32 = arith.constant 0 : i32
    %c0_i32_0 = arith.constant 0 : i32
    %c0_i32_1 = arith.constant 0 : i32
    %c0_i32_2 = arith.constant 0 : i32
    return %c0_i32, %c0_i32_0, %c0_i32_1 : i32, i32, i32
  }
  func.func @transform_2(%arg0: i32) -> (i32, i32, i32) {
    %c0_i32 = arith.constant 0 : i32
    %c0_i32_0 = arith.constant 0 : i32
    %c0_i32_1 = arith.constant 0 : i32
    %c0_i32_2 = arith.constant 0 : i32
    return %c0_i32, %c0_i32_0, %c0_i32_1 : i32, i32, i32
  }
  func.func @transform_3(%arg0: i32) -> (i32, i32, i32) {
    %c0_i32 = arith.constant 0 : i32
    %c0_i32_0 = arith.constant 0 : i32
    %c0_i32_1 = arith.constant 0 : i32
    %c0_i32_2 = arith.constant 0 : i32
    return %c0_i32, %c0_i32_0, %c0_i32_1 : i32, i32, i32
  }
  func.func @transform_4(%arg0: i32) -> (i32, i32, i32) {
    %c0_i32 = arith.constant 0 : i32
    %c0_i32_0 = arith.constant 0 : i32
    %c0_i32_1 = arith.constant 0 : i32
    %c0_i32_2 = arith.constant 0 : i32
    return %c0_i32, %c0_i32_0, %c0_i32_1 : i32, i32, i32
  }
  func.func @transform_5(%arg0: i32) -> (i32, i32, i32) {
    %c0_i32 = arith.constant 0 : i32
    %c0_i32_0 = arith.constant 0 : i32
    %c0_i32_1 = arith.constant 0 : i32
    %c0_i32_2 = arith.constant 0 : i32
    return %c0_i32, %c0_i32_0, %c0_i32_1 : i32, i32, i32
  }
  func.func @transform_6(%arg0: i32) -> (i32, i32, i32) {
    %c0_i32 = arith.constant 0 : i32
    %c0_i32_0 = arith.constant 0 : i32
    %c0_i32_1 = arith.constant 0 : i32
    %c0_i32_2 = arith.constant 0 : i32
    return %c0_i32, %c0_i32_0, %c0_i32_1 : i32, i32, i32
  }
  func.func @transform_7(%arg0: i32) -> (i32, i32, i32) {
    %c0_i32 = arith.constant 0 : i32
    %c0_i32_0 = arith.constant 0 : i32
    %c0_i32_1 = arith.constant 0 : i32
    return %c0_i32, %arg0, %c0_i32_0 : i32, i32, i32
  }
}

</mosaic_0001>

<llo_original>
// kernel: double_q_forward.1
$region0: #{double_q_forward.1}
  #allocation0 [shape = 'u32[]', space=smem, size = 0x4, offset = 0x4, fixed_abs, tag = 'smem constant byte address 0x4 - core index']
  #allocation1 [shape = 'u32[144,128]{1,0:T(1,128)}', space=vmem, size = 0x12000, scoped, tag = 'internal scratch']
  %s0 = inlined_call_operand.vmem [shape: f32[8,16], index: 0, kind: input, shape index: {}]
  %s1 = inlined_call_operand.vmem [shape: bf16[2,16,256], index: 1, kind: input, shape index: {}]
  %s2 = inlined_call_operand.vmem [shape: f32[2,1,256], index: 2, kind: input, shape index: {}]
  %s3 = inlined_call_operand.hbm [shape: bf16[2,256,256], index: 3, kind: input, shape index: {}]
  %s4 = inlined_call_operand.vmem [shape: f32[2,1,256], index: 4, kind: input, shape index: {}]
  %s5 = inlined_call_operand.vmem [shape: bf16[2,1,256], index: 5, kind: input, shape index: {}]
  %s6 = inlined_call_operand.vmem [shape: f32[2,1,1], index: 6, kind: input, shape index: {}]
  %s7 = inlined_call_operand.vmem [shape: f32[2,8,1], index: 7, kind: output, shape index: {}]
  %s8 = sld [smem:[#allocation0]]
  $region42: #{double_q_forward.1} parent=0
    _
  %s10 = ssub.s32 1, %s8
  %s11 = scalar_select 0, %s10, %s8
  $region1: #{double_q_forward.1} parent=0
    #allocation2 [shape = 'u8[262144]{0}', space=vmem, size = 0x40000, scoped, tag = 'input window, operand 3, single buffered']
    #allocation3 [shape = 's32[1]{0}', space=sflag, size = 0x4, scoped, tag = 'scoped memory for double_q_forward.1']
    %12 = vsyncpa [#allocation3], 0
    // Predicated region
    $region2: #{double_q_forward.1} parent=1 // pred_check
      _
    $region3: #{double_q_forward.1} parent=1 // pred_check_branch
      %14 = sbr.rel (0) target = $region5
    $region4: #{double_q_forward.1} parent=1 // pred_region
      _
    $region5: #{double_q_forward.1} parent=1 // pred_fallthru
      _
    // Predicated region
    $region6: #{double_q_forward.1} parent=1 // pred_check
      _
    $region7: #{double_q_forward.1} parent=1 // pred_check_branch
      %16 = sbr.rel (0) target = $region9
    $region8: #{double_q_forward.1} parent=1 // pred_region
      _
    $region9: #{double_q_forward.1} parent=1 // pred_fallthru
      _
    // Predicated region
    $region10: #{double_q_forward.1} parent=1 // pred_check
      _
    $region11: #{double_q_forward.1} parent=1 // pred_check_branch
      %18 = sbr.rel (0) target = $region13
    $region12: #{double_q_forward.1} parent=1 // pred_region
      _
    $region13: #{double_q_forward.1} parent=1 // pred_fallthru
      _
    // Predicated region
    $region14: #{double_q_forward.1} parent=1 // pred_check
      _
    $region15: #{double_q_forward.1} parent=1 // pred_check_branch
      %20 = sbr.rel (0) target = $region17
    $region16: #{double_q_forward.1} parent=1 // pred_region
      %s22 = ssub.s32 8192, 8192
      %23 = vsyncadd [#allocation3], %s22
      %s24 = sshll.u32 [#allocation2], 4
      %s25 = int_to_ptr.vmem [resolvable:$true] %s24
      %30 = dma.hbm_to_vmem [thread:$0]  %s3, 8192, %s25, [#allocation3], 128, 128, 8
    $region17: #{double_q_forward.1} parent=1 // pred_fallthru
      _
    // Predicated region
    $region18: #{double_q_forward.1} parent=1 // pred_check
      _
    $region19: #{double_q_forward.1} parent=1 // pred_check_branch
      %32 = sbr.rel (0) target = $region21
    $region20: #{double_q_forward.1} parent=1 // pred_region
      _
    $region21: #{double_q_forward.1} parent=1 // pred_fallthru
      _
    // Predicated region
    $region22: #{double_q_forward.1} parent=1 // pred_check
      _
    $region23: #{double_q_forward.1} parent=1 // pred_check_branch
      %34 = sbr.rel (0) target = $region25
    $region24: #{double_q_forward.1} parent=1 // pred_region
      _
    $region25: #{double_q_forward.1} parent=1 // pred_fallthru
      _
    // Predicated region
    $region26: #{double_q_forward.1} parent=1 // pred_check
      _
    $region27: #{double_q_forward.1} parent=1 // pred_check_branch
      %36 = sbr.rel (0) target = $region29
    $region28: #{double_q_forward.1} parent=1 // pred_region
      _
    $region29: #{double_q_forward.1} parent=1 // pred_fallthru
      _
    // Predicated region
    $region30: #{double_q_forward.1} parent=1 // pred_check
      _
    $region31: #{double_q_forward.1} parent=1 // pred_check_branch
      %38 = sbr.rel (0) target = $region33
    $region32: #{double_q_forward.1} parent=1 // pred_region
      %39 = dma.done [#allocation3], 8192
    $region33: #{double_q_forward.1} parent=1 // pred_fallthru
      _
    %v41 = vld [vmem:[%s0] sm:$0xff]
    %v42 = vpack.c.bf16 %v41, %v41
    %v43 = vld [vmem:[%s1] sm:$0xff]
    %v44 = vld [vmem:[%s1 + $0x8] sm:$0xff]
    %v45 = vld [vmem:[%s2] sm:$0x3]
    %v47 = vlaneseq
    %v48 = vshrl.u32 %v47, 7
    %v49 = vsub.s32 0, %v48
    %v50 = vrot.slane %v45, %v49
    %v51 = vlaneseq
    %v52 = vshrl.u32 %v51, 7
    %v53 = vsub.s32 1, %v52
    %v54 = vrot.slane %v45, %v53
    %v59 = vunpack.c.l.b16 %v43
    %v60 = vunpack.c.h.b16 %v43
    %v61 = vunpack.c.l.b16 %v44
    %v62 = vunpack.c.h.b16 %v44
    %v63 = vpack.c.b16 %v61, %v59
    %v64 = vpack.c.b16 %v62, %v60
    %vm67 = vcmask 130048
    %v69 = vsel %vm67, %v42, 0
    %71 = vmatprep.subr.bf16.mxu0 0
    %72 = vmatpush1.bf16.msra.mxu0 0
    %73 = vmatprep.subr.bf16.mxu0 0
    %74 = vmatpush1.bf16.msra.mxu0 0
    %75 = vmatprep.subr.bf16.mxu0 0
    %76 = vmatpush1.bf16.msra.mxu0 0
    %77 = vmatprep.subr.bf16.mxu0 0
    %78 = vmatpush1.bf16.msra.mxu0 0
    %79 = vmatprep.subr.bf16.mxu0 0
    %80 = vmatpush1.bf16.msra.mxu0 0
    %81 = vmatprep.subr.bf16.mxu0 0
    %82 = vmatpush1.bf16.msra.mxu0 0
    %83 = vmatprep.subr.bf16.mxu0 0
    %84 = vmatpush1.bf16.msra.mxu0 0
    %85 = vmatprep.subr.bf16.mxu0 %v64
    %86 = vmatpush1.bf16.msra.mxu0 %v63
    %87 = vmatprep.subr.bf16.mxu0 0
    %88 = vmatpush2.bf16.msra.mxu0 0
    %89 = vmatprep.subr.bf16.mxu0 0
    %90 = vmatpush2.bf16.msra.mxu0 0
    %91 = vmatprep.subr.bf16.mxu0 0
    %92 = vmatpush2.bf16.msra.mxu0 0
    %93 = vmatprep.subr.bf16.mxu0 0
    %94 = vmatpush2.bf16.msra.mxu0 0
    %95 = vmatprep.subr.bf16.mxu0 0
    %96 = vmatpush2.bf16.msra.mxu0 0
    %97 = vmatprep.subr.bf16.mxu0 0
    %98 = vmatpush2.bf16.msra.mxu0 0
    %99 = vmatprep.subr.bf16.mxu0 0
    %100 = vmatpush2.bf16.msra.mxu0 0
    %101 = vmatprep.subr.bf16.mxu0 0
    %102 = vmatpush2.bf16.msra.mxu0 0
    %103 = vmatprep.mubr.bf16.mxu0 0
    %104 = vmatmul.mubr.bf16.gmra.mxu0 %v69
    %v105 = vpop.f32.mrf.mxu0
    %v106 = vadd.f32 %v50, %v105
    %v107 = vpop.f32.mrf.mxu0
    %v108 = vadd.f32 %v54, %v107
    %v109 = vpop.f32.mrf.mxu0
    %v110 = vpop.f32.mrf.mxu0
    %111 = vdwg.mxu0
    %v112 = vmax.f32 %v106, 0.0
    %v113 = vmax.f32 %v108, 0.0
    %v114 = vpack.c.bf16 %v112, %v112
    %v115 = vpack.c.bf16 %v113, %v113
    %v116 = vld [vmem:[#allocation2] sm:$0xff]
    %v117 = vld [vmem:[#allocation2 + $0x8] sm:$0xff]
    %v118 = vld [vmem:[#allocation2 + $0x10] sm:$0xff]
    %v119 = vld [vmem:[#allocation2 + $0x18] sm:$0xff]
    %v120 = vld [vmem:[#allocation2 + $0x20] sm:$0xff]
    %v121 = vld [vmem:[#allocation2 + $0x28] sm:$0xff]
    %v122 = vld [vmem:[#allocation2 + $0x30] sm:$0xff]
    %v123 = vld [vmem:[#allocation2 + $0x38] sm:$0xff]
    %v124 = vld [vmem:[#allocation2 + $0x40] sm:$0xff]
    %v125 = vld [vmem:[#allocation2 + $0x48] sm:$0xff]
    %v126 = vld [vmem:[#allocation2 + $0x50] sm:$0xff]
    %v127 = vld [vmem:[#allocation2 + $0x58] sm:$0xff]
    %v128 = vld [vmem:[#allocation2 + $0x60] sm:$0xff]
    %v129 = vld [vmem:[#allocation2 + $0x68] sm:$0xff]
    %v130 = vld [vmem:[#allocation2 + $0x70] sm:$0xff]
    %v131 = vld [vmem:[#allocation2 + $0x78] sm:$0xff]
    %v132 = vld [vmem:[#allocation2 + $0x80] sm:$0xff]
    %v133 = vld [vmem:[#allocation2 + $0x88] sm:$0xff]
    %v134 = vld [vmem:[#allocation2 + $0x90] sm:$0xff]
    %v135 = vld [vmem:[#allocation2 + $0x98] sm:$0xff]
    %v136 = vld [vmem:[#allocation2 + $0xa0] sm:$0xff]
    %v137 = vld [vmem:[#allocation2 + $0xa8] sm:$0xff]
    %v138 = vld [vmem:[#allocation2 + $0xb0] sm:$0xff]
    %v139 = vld [vmem:[#allocation2 + $0xb8] sm:$0xff]
    %v140 = vld [vmem:[#allocation2 + $0xc0] sm:$0xff]
    %v141 = vld [vmem:[#allocation2 + $0xc8] sm:$0xff]
    %v142 = vld [vmem:[#allocation2 + $0xd0] sm:$0xff]
    %v143 = vld [vmem:[#allocation2 + $0xd8] sm:$0xff]
    %v144 = vld [vmem:[#allocation2 + $0xe0] sm:$0xff]
    %v145 = vld [vmem:[#allocation2 + $0xe8] sm:$0xff]
    %v146 = vld [vmem:[#allocation2 + $0xf0] sm:$0xff]
    %v147 = vld [vmem:[#allocation2 + $0xf8] sm:$0xff]
    %v148 = vld [vmem:[%s4] sm:$0x3]
    %v150 = vlaneseq
    %v151 = vshrl.u32 %v150, 7
    %v152 = vsub.s32 0, %v151
    %v153 = vrot.slane %v148, %v152
    %v154 = vlaneseq
    %v155 = vshrl.u32 %v154, 7
    %v156 = vsub.s32 1, %v155
    %v157 = vrot.slane %v148, %v156
    %v192 = vunpack.c.l.b16 %v116
    %v193 = vunpack.c.h.b16 %v116
    %v194 = vunpack.c.l.b16 %v117
    %v195 = vunpack.c.h.b16 %v117
    %v196 = vunpack.c.l.b16 %v118
    %v197 = vunpack.c.h.b16 %v118
    %v198 = vunpack.c.l.b16 %v119
    %v199 = vunpack.c.h.b16 %v119
    %v200 = vunpack.c.l.b16 %v120
    %v201 = vunpack.c.h.b16 %v120
    %v202 = vunpack.c.l.b16 %v121
    %v203 = vunpack.c.h.b16 %v121
    %v204 = vunpack.c.l.b16 %v122
    %v205 = vunpack.c.h.b16 %v122
    %v206 = vunpack.c.l.b16 %v123
    %v207 = vunpack.c.h.b16 %v123
    %v208 = vunpack.c.l.b16 %v124
    %v209 = vunpack.c.h.b16 %v124
    %v210 = vunpack.c.l.b16 %v125
    %v211 = vunpack.c.h.b16 %v125
    %v212 = vunpack.c.l.b16 %v126
    %v213 = vunpack.c.h.b16 %v126
    %v214 = vunpack.c.l.b16 %v127
    %v215 = vunpack.c.h.b16 %v127
    %v216 = vunpack.c.l.b16 %v128
    %v217 = vunpack.c.h.b16 %v128
    %v218 = vunpack.c.l.b16 %v129
    %v219 = vunpack.c.h.b16 %v129
    %v220 = vunpack.c.l.b16 %v130
    %v221 = vunpack.c.h.b16 %v130
    %v222 = vunpack.c.l.b16 %v131
    %v223 = vunpack.c.h.b16 %v131
    %v224 = vunpack.c.l.b16 %v132
    %v225 = vunpack.c.h.b16 %v132
    %v226 = vunpack.c.l.b16 %v133
    %v227 = vunpack.c.h.b16 %v133
    %v228 = vunpack.c.l.b16 %v134
    %v229 = vunpack.c.h.b16 %v134
    %v230 = vunpack.c.l.b16 %v135
    %v231 = vunpack.c.h.b16 %v135
    %v232 = vunpack.c.l.b16 %v136
    %v233 = vunpack.c.h.b16 %v136
    %v234 = vunpack.c.l.b16 %v137
    %v235 = vunpack.c.h.b16 %v137
    %v236 = vunpack.c.l.b16 %v138
    %v237 = vunpack.c.h.b16 %v138
    %v238 = vunpack.c.l.b16 %v139
    %v239 = vunpack.c.h.b16 %v139
    %v240 = vunpack.c.l.b16 %v140
    %v241 = vunpack.c.h.b16 %v140
    %v242 = vunpack.c.l.b16 %v141
    %v243 = vunpack.c.h.b16 %v141
    %v244 = vunpack.c.l.b16 %v142
    %v245 = vunpack.c.h.b16 %v142
    %v246 = vunpack.c.l.b16 %v143
    %v247 = vunpack.c.h.b16 %v143
    %v248 = vunpack.c.l.b16 %v144
    %v249 = vunpack.c.h.b16 %v144
    %v250 = vunpack.c.l.b16 %v145
    %v251 = vunpack.c.h.b16 %v145
    %v252 = vunpack.c.l.b16 %v146
    %v253 = vunpack.c.h.b16 %v146
    %v254 = vunpack.c.l.b16 %v147
    %v255 = vunpack.c.h.b16 %v147
    %v256 = vpack.c.b16 %v194, %v192
    %v257 = vpack.c.b16 %v195, %v193
    %v258 = vpack.c.b16 %v198, %v196
    %v259 = vpack.c.b16 %v199, %v197
    %v260 = vpack.c.b16 %v202, %v200
    %v261 = vpack.c.b16 %v203, %v201
    %v262 = vpack.c.b16 %v206, %v204
    %v263 = vpack.c.b16 %v207, %v205
    %v264 = vpack.c.b16 %v210, %v208
    %v265 = vpack.c.b16 %v211, %v209
    %v266 = vpack.c.b16 %v214, %v212
    %v267 = vpack.c.b16 %v215, %v213
    %v268 = vpack.c.b16 %v218, %v216
    %v269 = vpack.c.b16 %v219, %v217
    %v270 = vpack.c.b16 %v222, %v220
    %v271 = vpack.c.b16 %v223, %v221
    %v272 = vpack.c.b16 %v226, %v224
    %v273 = vpack.c.b16 %v227, %v225
    %v274 = vpack.c.b16 %v230, %v228
    %v275 = vpack.c.b16 %v231, %v229
    %v276 = vpack.c.b16 %v234, %v232
    %v277 = vpack.c.b16 %v235, %v233
    %v278 = vpack.c.b16 %v238, %v236
    %v279 = vpack.c.b16 %v239, %v237
    %v280 = vpack.c.b16 %v242, %v240
    %v281 = vpack.c.b16 %v243, %v241
    %v282 = vpack.c.b16 %v246, %v244
    %v283 = vpack.c.b16 %v247, %v245
    %v284 = vpack.c.b16 %v250, %v248
    %v285 = vpack.c.b16 %v251, %v249
    %v286 = vpack.c.b16 %v254, %v252
    %v287 = vpack.c.b16 %v255, %v253
    %320 = vmatprep.subr.bf16.mxu0 %v271
    %321 = vmatpush1.bf16.msra.mxu0 %v270
    %322 = vmatprep.subr.bf16.mxu0 %v269
    %323 = vmatpush1.bf16.msra.mxu0 %v268
    %324 = vmatprep.subr.bf16.mxu0 %v267
    %325 = vmatpush1.bf16.msra.mxu0 %v266
    %326 = vmatprep.subr.bf16.mxu0 %v265
    %327 = vmatpush1.bf16.msra.mxu0 %v264
    %328 = vmatprep.subr.bf16.mxu0 %v263
    %329 = vmatpush1.bf16.msra.mxu0 %v262
    %330 = vmatprep.subr.bf16.mxu0 %v261
    %331 = vmatpush1.bf16.msra.mxu0 %v260
    %332 = vmatprep.subr.bf16.mxu0 %v259
    %333 = vmatpush1.bf16.msra.mxu0 %v258
    %334 = vmatprep.subr.bf16.mxu0 %v257
    %335 = vmatpush1.bf16.msra.mxu0 %v256
    %336 = vmatprep.subr.bf16.mxu0 %v287
    %337 = vmatpush2.bf16.msra.mxu0 %v286
    %338 = vmatprep.subr.bf16.mxu0 %v285
    %339 = vmatpush2.bf16.msra.mxu0 %v284
    %340 = vmatprep.subr.bf16.mxu0 %v283
    %341 = vmatpush2.bf16.msra.mxu0 %v282
    %342 = vmatprep.subr.bf16.mxu0 %v281
    %343 = vmatpush2.bf16.msra.mxu0 %v280
    %344 = vmatprep.subr.bf16.mxu0 %v279
    %345 = vmatpush2.bf16.msra.mxu0 %v278
    %346 = vmatprep.subr.bf16.mxu0 %v277
    %347 = vmatpush2.bf16.msra.mxu0 %v276
    %348 = vmatprep.subr.bf16.mxu0 %v275
    %349 = vmatpush2.bf16.msra.mxu0 %v274
    %350 = vmatprep.subr.bf16.mxu0 %v273
    %351 = vmatpush2.bf16.msra.mxu0 %v272
    %352 = vmatprep.mubr.bf16.mxu0 %v115
    %353 = vmatmul.mubr.bf16.gmra.mxu0 %v114
    %v354 = vpop.f32.mrf.mxu0
    %v355 = vadd.f32 %v153, %v354
    %v356 = vpop.f32.mrf.mxu0
    %v357 = vadd.f32 %v157, %v356
    %v358 = vpop.f32.mrf.mxu0
    %v359 = vpop.f32.mrf.mxu0
    %360 = vdwg.mxu0
    %v361 = vmax.f32 %v355, 0.0
    %v362 = vmax.f32 %v357, 0.0
    %v363 = vld [vmem:[%s5] sm:$0x3]
    %v364 = vunpack.c.l.bf16 %v363
    %v366 = vlaneseq
    %v367 = vshrl.u32 %v366, 7
    %v368 = vsub.s32 0, %v367
    %v369 = vrot.slane %v364, %v368
    %v370 = vlaneseq
    %v371 = vshrl.u32 %v370, 7
    %v372 = vsub.s32 2, %v371
    %v373 = vrot.slane %v364, %v372
    %v376 = vlaneseq
    %v377 = vshrl.u32 %v376, 7
    %v378 = vsub.s32 0, %v377
    %v379 = vrot.slane %v369, %v378
    %v380 = vlaneseq
    %v381 = vshrl.u32 %v380, 7
    %v382 = vsub.s32 0, %v381
    %v383 = vrot.slane %v373, %v382
    %v384 = vmul.f32 %v361, %v379
    %v385 = vmul.f32 %v362, %v383
    %v386 = vadd.f32 %v384, %v385
    %387 = vadd.xlane.f32.xlu0 %v386
    %v388 = vpop.xlane.xlu0 %387
    %v389 = vld [vmem:[%s6] sm:$0x1]
    %v391 = vlaneseq
    %v392 = vshrl.u32 %v391, 7
    %v393 = vsub.s32 0, %v392
    %v394 = vrot.slane %v389, %v393
    %v396 = vadd.f32 %v388, %v394
    %vm397 = vcmask 7168
    %398 = vst.msk [vmem:[%s7] sm:$0xff] %vm397, %v396
    %s399 = scalar_lea.vmem %s1, 16
    %v400 = vld [vmem:[%s399] sm:$0xff]
    %v401 = vld [vmem:[%s399 + $0x8] sm:$0xff]
    %s402 = scalar_lea.vmem %s2, 2
    %v403 = vld [vmem:[%s402] sm:$0x3]
    %v405 = vlaneseq
    %v406 = vshrl.u32 %v405, 7
    %v407 = vsub.s32 0, %v406
    %v408 = vrot.slane %v403, %v407
    %v409 = vlaneseq
    %v410 = vshrl.u32 %v409, 7
    %v411 = vsub.s32 1, %v410
    %v412 = vrot.slane %v403, %v411
    %v417 = vunpack.c.l.b16 %v400
    %v418 = vunpack.c.h.b16 %v400
    %v419 = vunpack.c.l.b16 %v401
    %v420 = vunpack.c.h.b16 %v401
    %v421 = vpack.c.b16 %v419, %v417
    %v422 = vpack.c.b16 %v420, %v418
    %425 = vmatprep.subr.bf16.mxu0 0
    %426 = vmatpush1.bf16.msra.mxu0 0
    %427 = vmatprep.subr.bf16.mxu0 0
    %428 = vmatpush1.bf16.msra.mxu0 0
    %429 = vmatprep.subr.bf16.mxu0 0
    %430 = vmatpush1.bf16.msra.mxu0 0
    %431 = vmatprep.subr.bf16.mxu0 0
    %432 = vmatpush1.bf16.msra.mxu0 0
    %433 = vmatprep.subr.bf16.mxu0 0
    %434 = vmatpush1.bf16.msra.mxu0 0
    %435 = vmatprep.subr.bf16.mxu0 0
    %436 = vmatpush1.bf16.msra.mxu0 0
    %437 = vmatprep.subr.bf16.mxu0 0
    %438 = vmatpush1.bf16.msra.mxu0 0
    %439 = vmatprep.subr.bf16.mxu0 %v422
    %440 = vmatpush1.bf16.msra.mxu0 %v421
    %441 = vmatprep.subr.bf16.mxu0 0
    %442 = vmatpush2.bf16.msra.mxu0 0
    %443 = vmatprep.subr.bf16.mxu0 0
    %444 = vmatpush2.bf16.msra.mxu0 0
    %445 = vmatprep.subr.bf16.mxu0 0
    %446 = vmatpush2.bf16.msra.mxu0 0
    %447 = vmatprep.subr.bf16.mxu0 0
    %448 = vmatpush2.bf16.msra.mxu0 0
    %449 = vmatprep.subr.bf16.mxu0 0
    %450 = vmatpush2.bf16.msra.mxu0 0
    %451 = vmatprep.subr.bf16.mxu0 0
    %452 = vmatpush2.bf16.msra.mxu0 0
    %453 = vmatprep.subr.bf16.mxu0 0
    %454 = vmatpush2.bf16.msra.mxu0 0
    %455 = vmatprep.subr.bf16.mxu0 0
    %456 = vmatpush2.bf16.msra.mxu0 0
    %457 = vmatprep.mubr.bf16.mxu0 0
    %458 = vmatmul.mubr.bf16.gmra.mxu0 %v69
    %v459 = vpop.f32.mrf.mxu0
    %v460 = vadd.f32 %v408, %v459
    %v461 = vpop.f32.mrf.mxu0
    %v462 = vadd.f32 %v412, %v461
    %v463 = vpop.f32.mrf.mxu0
    %v464 = vpop.f32.mrf.mxu0
    %465 = vdwg.mxu0
    %v466 = vmax.f32 %v460, 0.0
    %v467 = vmax.f32 %v462, 0.0
    %v468 = vpack.c.bf16 %v466, %v466
    %v469 = vpack.c.bf16 %v467, %v467
    %s470 = scalar_lea.vmem [#allocation2], 256
    %v471 = vld [vmem:[%s470] sm:$0xff]
    %v472 = vld [vmem:[%s470 + $0x8] sm:$0xff]
    %v473 = vld [vmem:[%s470 + $0x10] sm:$0xff]
    %v474 = vld [vmem:[%s470 + $0x18] sm:$0xff]
    %v475 = vld [vmem:[%s470 + $0x20] sm:$0xff]
    %v476 = vld [vmem:[%s470 + $0x28] sm:$0xff]
    %v477 = vld [vmem:[%s470 + $0x30] sm:$0xff]
    %v478 = vld [vmem:[%s470 + $0x38] sm:$0xff]
    %v479 = vld [vmem:[%s470 + $0x40] sm:$0xff]
    %v480 = vld [vmem:[%s470 + $0x48] sm:$0xff]
    %v481 = vld [vmem:[%s470 + $0x50] sm:$0xff]
    %v482 = vld [vmem:[%s470 + $0x58] sm:$0xff]
    %v483 = vld [vmem:[%s470 + $0x60] sm:$0xff]
    %v484 = vld [vmem:[%s470 + $0x68] sm:$0xff]
    %v485 = vld [vmem:[%s470 + $0x70] sm:$0xff]
    %v486 = vld [vmem:[%s470 + $0x78] sm:$0xff]
    %v487 = vld [vmem:[%s470 + $0x80] sm:$0xff]
    %v488 = vld [vmem:[%s470 + $0x88] sm:$0xff]
    %v489 = vld [vmem:[%s470 + $0x90] sm:$0xff]
    %v490 = vld [vmem:[%s470 + $0x98] sm:$0xff]
    %v491 = vld [vmem:[%s470 + $0xa0] sm:$0xff]
    %v492 = vld [vmem:[%s470 + $0xa8] sm:$0xff]
    %v493 = vld [vmem:[%s470 + $0xb0] sm:$0xff]
    %v494 = vld [vmem:[%s470 + $0xb8] sm:$0xff]
    %v495 = vld [vmem:[%s470 + $0xc0] sm:$0xff]
    %v496 = vld [vmem:[%s470 + $0xc8] sm:$0xff]
    %v497 = vld [vmem:[%s470 + $0xd0] sm:$0xff]
    %v498 = vld [vmem:[%s470 + $0xd8] sm:$0xff]
    %v499 = vld [vmem:[%s470 + $0xe0] sm:$0xff]
    %v500 = vld [vmem:[%s470 + $0xe8] sm:$0xff]
    %v501 = vld [vmem:[%s470 + $0xf0] sm:$0xff]
    %v502 = vld [vmem:[%s470 + $0xf8] sm:$0xff]
    %s503 = scalar_lea.vmem %s4, 2
    %v504 = vld [vmem:[%s503] sm:$0x3]
    %v506 = vlaneseq
    %v507 = vshrl.u32 %v506, 7
    %v508 = vsub.s32 0, %v507
    %v509 = vrot.slane %v504, %v508
    %v510 = vlaneseq
    %v511 = vshrl.u32 %v510, 7
    %v512 = vsub.s32 1, %v511
    %v513 = vrot.slane %v504, %v512
    %v548 = vunpack.c.l.b16 %v471
    %v549 = vunpack.c.h.b16 %v471
    %v550 = vunpack.c.l.b16 %v472
    %v551 = vunpack.c.h.b16 %v472
    %v552 = vunpack.c.l.b16 %v473
    %v553 = vunpack.c.h.b16 %v473
    %v554 = vunpack.c.l.b16 %v474
    %v555 = vunpack.c.h.b16 %v474
    %v556 = vunpack.c.l.b16 %v475
    %v557 = vunpack.c.h.b16 %v475
    %v558 = vunpack.c.l.b16 %v476
    %v559 = vunpack.c.h.b16 %v476
    %v560 = vunpack.c.l.b16 %v477
    %v561 = vunpack.c.h.b16 %v477
    %v562 = vunpack.c.l.b16 %v478
    %v563 = vunpack.c.h.b16 %v478
    %v564 = vunpack.c.l.b16 %v479
    %v565 = vunpack.c.h.b16 %v479
    %v566 = vunpack.c.l.b16 %v480
    %v567 = vunpack.c.h.b16 %v480
    %v568 = vunpack.c.l.b16 %v481
    %v569 = vunpack.c.h.b16 %v481
    %v570 = vunpack.c.l.b16 %v482
    %v571 = vunpack.c.h.b16 %v482
    %v572 = vunpack.c.l.b16 %v483
    %v573 = vunpack.c.h.b16 %v483
    %v574 = vunpack.c.l.b16 %v484
    %v575 = vunpack.c.h.b16 %v484
    %v576 = vunpack.c.l.b16 %v485
    %v577 = vunpack.c.h.b16 %v485
    %v578 = vunpack.c.l.b16 %v486
    %v579 = vunpack.c.h.b16 %v486
    %v580 = vunpack.c.l.b16 %v487
    %v581 = vunpack.c.h.b16 %v487
    %v582 = vunpack.c.l.b16 %v488
    %v583 = vunpack.c.h.b16 %v488
    %v584 = vunpack.c.l.b16 %v489
    %v585 = vunpack.c.h.b16 %v489
    %v586 = vunpack.c.l.b16 %v490
    %v587 = vunpack.c.h.b16 %v490
    %v588 = vunpack.c.l.b16 %v491
    %v589 = vunpack.c.h.b16 %v491
    %v590 = vunpack.c.l.b16 %v492
    %v591 = vunpack.c.h.b16 %v492
    %v592 = vunpack.c.l.b16 %v493
    %v593 = vunpack.c.h.b16 %v493
    %v594 = vunpack.c.l.b16 %v494
    %v595 = vunpack.c.h.b16 %v494
    %v596 = vunpack.c.l.b16 %v495
    %v597 = vunpack.c.h.b16 %v495
    %v598 = vunpack.c.l.b16 %v496
    %v599 = vunpack.c.h.b16 %v496
    %v600 = vunpack.c.l.b16 %v497
    %v601 = vunpack.c.h.b16 %v497
    %v602 = vunpack.c.l.b16 %v498
    %v603 = vunpack.c.h.b16 %v498
    %v604 = vunpack.c.l.b16 %v499
    %v605 = vunpack.c.h.b16 %v499
    %v606 = vunpack.c.l.b16 %v500
    %v607 = vunpack.c.h.b16 %v500
    %v608 = vunpack.c.l.b16 %v501
    %v609 = vunpack.c.h.b16 %v501
    %v610 = vunpack.c.l.b16 %v502
    %v611 = vunpack.c.h.b16 %v502
    %v612 = vpack.c.b16 %v550, %v548
    %v613 = vpack.c.b16 %v551, %v549
    %v614 = vpack.c.b16 %v554, %v552
    %v615 = vpack.c.b16 %v555, %v553
    %v616 = vpack.c.b16 %v558, %v556
    %v617 = vpack.c.b16 %v559, %v557
    %v618 = vpack.c.b16 %v562, %v560
    %v619 = vpack.c.b16 %v563, %v561
    %v620 = vpack.c.b16 %v566, %v564
    %v621 = vpack.c.b16 %v567, %v565
    %v622 = vpack.c.b16 %v570, %v568
    %v623 = vpack.c.b16 %v571, %v569
    %v624 = vpack.c.b16 %v574, %v572
    %v625 = vpack.c.b16 %v575, %v573
    %v626 = vpack.c.b16 %v578, %v576
    %v627 = vpack.c.b16 %v579, %v577
    %v628 = vpack.c.b16 %v582, %v580
    %v629 = vpack.c.b16 %v583, %v581
    %v630 = vpack.c.b16 %v586, %v584
    %v631 = vpack.c.b16 %v587, %v585
    %v632 = vpack.c.b16 %v590, %v588
    %v633 = vpack.c.b16 %v591, %v589
    %v634 = vpack.c.b16 %v594, %v592
    %v635 = vpack.c.b16 %v595, %v593
    %v636 = vpack.c.b16 %v598, %v596
    %v637 = vpack.c.b16 %v599, %v597
    %v638 = vpack.c.b16 %v602, %v600
    %v639 = vpack.c.b16 %v603, %v601
    %v640 = vpack.c.b16 %v606, %v604
    %v641 = vpack.c.b16 %v607, %v605
    %v642 = vpack.c.b16 %v610, %v608
    %v643 = vpack.c.b16 %v611, %v609
    %676 = vmatprep.subr.bf16.mxu0 %v627
    %677 = vmatpush1.bf16.msra.mxu0 %v626
    %678 = vmatprep.subr.bf16.mxu0 %v625
    %679 = vmatpush1.bf16.msra.mxu0 %v624
    %680 = vmatprep.subr.bf16.mxu0 %v623
    %681 = vmatpush1.bf16.msra.mxu0 %v622
    %682 = vmatprep.subr.bf16.mxu0 %v621
    %683 = vmatpush1.bf16.msra.mxu0 %v620
    %684 = vmatprep.subr.bf16.mxu0 %v619
    %685 = vmatpush1.bf16.msra.mxu0 %v618
    %686 = vmatprep.subr.bf16.mxu0 %v617
    %687 = vmatpush1.bf16.msra.mxu0 %v616
    %688 = vmatprep.subr.bf16.mxu0 %v615
    %689 = vmatpush1.bf16.msra.mxu0 %v614
    %690 = vmatprep.subr.bf16.mxu0 %v613
    %691 = vmatpush1.bf16.msra.mxu0 %v612
    %692 = vmatprep.subr.bf16.mxu0 %v643
    %693 = vmatpush2.bf16.msra.mxu0 %v642
    %694 = vmatprep.subr.bf16.mxu0 %v641
    %695 = vmatpush2.bf16.msra.mxu0 %v640
    %696 = vmatprep.subr.bf16.mxu0 %v639
    %697 = vmatpush2.bf16.msra.mxu0 %v638
    %698 = vmatprep.subr.bf16.mxu0 %v637
    %699 = vmatpush2.bf16.msra.mxu0 %v636
    %700 = vmatprep.subr.bf16.mxu0 %v635
    %701 = vmatpush2.bf16.msra.mxu0 %v634
    %702 = vmatprep.subr.bf16.mxu0 %v633
    %703 = vmatpush2.bf16.msra.mxu0 %v632
    %704 = vmatprep.subr.bf16.mxu0 %v631
    %705 = vmatpush2.bf16.msra.mxu0 %v630
    %706 = vmatprep.subr.bf16.mxu0 %v629
    %707 = vmatpush2.bf16.msra.mxu0 %v628
    %708 = vmatprep.mubr.bf16.mxu0 %v469
    %709 = vmatmul.mubr.bf16.gmra.mxu0 %v468
    %v710 = vpop.f32.mrf.mxu0
    %v711 = vadd.f32 %v509, %v710
    %v712 = vpop.f32.mrf.mxu0
    %v713 = vadd.f32 %v513, %v712
    %v714 = vpop.f32.mrf.mxu0
    %v715 = vpop.f32.mrf.mxu0
    %716 = vdwg.mxu0
    %v717 = vmax.f32 %v711, 0.0
    %v718 = vmax.f32 %v713, 0.0
    %s719 = scalar_lea.vmem %s5, 2
    %v720 = vld [vmem:[%s719] sm:$0x3]
    %v721 = vunpack.c.l.bf16 %v720
    %v723 = vlaneseq
    %v724 = vshrl.u32 %v723, 7
    %v725 = vsub.s32 0, %v724
    %v726 = vrot.slane %v721, %v725
    %v727 = vlaneseq
    %v728 = vshrl.u32 %v727, 7
    %v729 = vsub.s32 2, %v728
    %v730 = vrot.slane %v721, %v729
    %v733 = vlaneseq
    %v734 = vshrl.u32 %v733, 7
    %v735 = vsub.s32 0, %v734
    %v736 = vrot.slane %v726, %v735
    %v737 = vlaneseq
    %v738 = vshrl.u32 %v737, 7
    %v739 = vsub.s32 0, %v738
    %v740 = vrot.slane %v730, %v739
    %v741 = vmul.f32 %v717, %v736
    %v742 = vmul.f32 %v718, %v740
    %v743 = vadd.f32 %v741, %v742
    %744 = vadd.xlane.f32.xlu0 %v743
    %v745 = vpop.xlane.xlu0 %744
    %s746 = scalar_lea.vmem %s6, 1
    %v747 = vld [vmem:[%s746] sm:$0x1]
    %v749 = vlaneseq
    %v750 = vshrl.u32 %v749, 7
    %v751 = vsub.s32 0, %v750
    %v752 = vrot.slane %v747, %v751
    %v754 = vadd.f32 %v745, %v752
    %s755 = scalar_lea.vmem %s7, 8
    %756 = vst.msk [vmem:[%s755] sm:$0xff] %vm397, %v754
    // Predicated region
    $region34: #{double_q_forward.1} parent=1 // pred_check
      _
    $region35: #{double_q_forward.1} parent=1 // pred_check_branch
      %758 = sbr.rel (0) target = $region37
    $region36: #{double_q_forward.1} parent=1 // pred_region
      _
    $region37: #{double_q_forward.1} parent=1 // pred_fallthru
      _
    // Predicated region
    $region38: #{double_q_forward.1} parent=1 // pred_check
      _
    $region39: #{double_q_forward.1} parent=1 // pred_check_branch
      %760 = sbr.rel (0) target = $region41
    $region40: #{double_q_forward.1} parent=1 // pred_region
      _
    $region41: #{double_q_forward.1} parent=1 // pred_fallthru
      _
    %761 = vsyncpa [#allocation3], 1

</llo_original>
